<compile_context>
chip_gen: v6e
topology: v6e:2x2x1
jax: 0.10.0
libtpu: 0.0.40
codegen_flags: <defaults>
</compile_context>

<pallas_src>
import functools

import jax
import jax.numpy as jnp
from jax.experimental import pallas as pl
from jax.experimental.pallas import tpu as pltpu


def _round_up(v, mult):
    return ((v + mult - 1) // mult) * mult


def _svd_linear_kernel(x_ref, w1t_ref, w2t_ref, b_ref, o_ref, h_ref):
    # x_ref  : (TM, in_features)        bf16
    # w1t_ref: (in_features, rank_pad)  bf16
    # w2t_ref: (rank_pad, TN)           bf16
    # b_ref  : (1, TN)                  f32
    # o_ref  : (TM, TN)                 x.dtype
    # h_ref  : (TM, rank_pad)           bf16 VMEM scratch (intermediate h)
    h = jnp.dot(x_ref[...], w1t_ref[...], preferred_element_type=jnp.float32)
    h_ref[...] = h.astype(h_ref.dtype)
    out = jnp.dot(h_ref[...], w2t_ref[...], preferred_element_type=jnp.float32)
    # Bias add / final cast in f32 on the VPU (fast on all of v5e/v6e/v7x).
    o_ref[...] = (out + b_ref[...]).astype(o_ref.dtype)


@functools.partial(jax.jit, static_argnames=("block_m", "block_n"))
def svd_linear_forward(x, w1t, w2t, bias, *, block_m=256, block_n=512):
    """x: (..., in_features) -> (..., out_features), two-factor SVD linear."""
    in_features, rank = w1t.shape
    rank2, out_features = w2t.shape
    assert rank2 == rank
    out_dtype = x.dtype

    lead_shape = x.shape[:-1]
    x2d = x.reshape(-1, in_features)
    m = x2d.shape[0]

    # ---- hardware-friendly padded sizes ----------------------------------
    rank_pad = _round_up(rank, 128)        # 160 -> 256
    out_pad = _round_up(out_features, 128)  # 192 -> 256

    # M tile: large to amortize per-step overhead and fill MXU rows, clamped
    # so tiny token counts are not over-padded; always a multiple of 8.
    tm = min(block_m, _round_up(m, 8))
    m_pad = _round_up(m, tm)

    # N tile: whole padded width if it fits the budget, else the largest
    # 128-multiple divisor (lane-dense stores, bounded VMEM on v7x).
    if out_pad <= block_n:
        tn = out_pad
    else:
        tn = max(t for t in range(128, block_n + 1, 128) if out_pad % t == 0)

    # ---- operand prep: zero-pad + bf16 cast (bf16 MXU, half the HBM bytes) -
    xp = jnp.zeros((m_pad, in_features), jnp.bfloat16).at[:m, :].set(
        x2d.astype(jnp.bfloat16))
    w1tp = jnp.zeros((in_features, rank_pad), jnp.bfloat16).at[:, :rank].set(
        w1t.astype(jnp.bfloat16))
    w2tp = jnp.zeros((rank_pad, out_pad), jnp.bfloat16).at[:rank, :out_features].set(
        w2t.astype(jnp.bfloat16))
    bp = jnp.zeros((1, out_pad), jnp.float32).at[0, :out_features].set(
        bias.astype(jnp.float32))

    grid = (m_pad // tm, out_pad // tn)

    out_itemsize = jnp.dtype(out_dtype).itemsize
    flops = 2 * m_pad * (in_features * rank_pad + rank_pad * out_pad)
    bytes_accessed = (xp.size * 2 + w1tp.size * 2 + w2tp.size * 2
                      + bp.size * 4 + m_pad * out_pad * out_itemsize)

    out2d = pl.pallas_call(
        _svd_linear_kernel,
        out_shape=jax.ShapeDtypeStruct((m_pad, out_pad), out_dtype),
        grid_spec=pltpu.PrefetchScalarGridSpec(
            num_scalar_prefetch=0,
            grid=grid,
            in_specs=[
                pl.BlockSpec((tm, in_features), lambda i, j: (i, 0)),
                # Constant-index weight/bias blocks: fetched once, resident.
                pl.BlockSpec((in_features, rank_pad), lambda i, j: (0, 0)),
                pl.BlockSpec((rank_pad, tn), lambda i, j: (0, j)),
                pl.BlockSpec((1, tn), lambda i, j: (0, j)),
            ],
            out_specs=pl.BlockSpec((tm, tn), lambda i, j: (i, j)),
            scratch_shapes=[pltpu.VMEM((tm, rank_pad), jnp.bfloat16)],
        ),
        compiler_params=pltpu.CompilerParams(
            dimension_semantics=("parallel", "parallel"),
            # Explicit scoped-VMEM budget with headroom on v7x (64 MiB VMEM).
            vmem_limit_bytes=48 * 1024 * 1024,
        ),
        cost_estimate=pl.CostEstimate(
            flops=flops, transcendentals=0, bytes_accessed=bytes_accessed),
    )(xp, w1tp, w2tp, bp)

    return out2d[:m, :out_features].reshape(*lead_shape, out_features)


def make_svd_factors(key, in_features, out_features, rank, dtype=jnp.float32):
    """Deterministically build SVD factors of a random dense weight, mirroring
    SVDLinear(dense_w, dense_b, rank) initialization."""
    k_w, k_b = jax.random.split(key)
    dense_w = jax.random.normal(k_w, (out_features, in_features), jnp.float32) * 0.02
    bias = jax.random.normal(k_b, (out_features,), jnp.float32) * 0.01

    # dense_w = U S V^T ; first_factor.weight = diag(sqrt(s)) V^T  (rank, in)
    #                     last_factor.weight  = U diag(sqrt(s))    (out, rank)
    u, s, vt = jnp.linalg.svd(dense_w, full_matrices=False)
    u_r = u[:, :rank]
    s_r = s[:rank]
    vt_r = vt[:rank, :]
    sqrt_s = jnp.sqrt(s_r)
    w1 = sqrt_s[:, None] * vt_r            # (rank, in_features)
    w2 = u_r * sqrt_s[None, :]             # (out_features, rank)

    # kernel takes pre-transposed weights: W1T (in, rank), W2T (rank, out)
    return w1.T.astype(dtype), w2.T.astype(dtype), bias.astype(dtype)


if __name__ == "__main__":
    # Smallest legal config: min(in, out) must be a key of Rank_Step_Size.
    in_features = 192
    out_features = 192
    rank = 160                       # max(Rank_Step_Size[192])
    batch, seq = 2, 8                # ViT-style token input (B, N, C)

    key = jax.random.PRNGKey(0)
    k_x, k_p = jax.random.split(key)

    x = jax.random.normal(k_x, (batch, seq, in_features), jnp.float32)
    w1t, w2t, bias = make_svd_factors(k_p, in_features, out_features, rank)

    out = svd_linear_forward(x, w1t, w2t, bias)
    out = jax.block_until_ready(out)

    # f32 reference of the same two-factor linear.  The kernel uses bf16 MXU
    # operands with f32 accumulation, so tolerances are loosened accordingly.
    ref = (x.reshape(-1, in_features) @ w1t) @ w2t + bias
    ref = ref.reshape(batch, seq, out_features)
    assert out.shape == (batch, seq, out_features)
    assert jnp.allclose(out, ref, atol=2e-2, rtol=2e-2), float(
        jnp.max(jnp.abs(out - ref)))

    print("KERNEL_OK")
</pallas_src>

<mosaic_0001>
module attributes {stable_mosaic.version = 11 : i64} {
  func.func @_svd_linear_kernel(%arg0: i32, %arg1: i32, %arg2: memref<16x192xbf16, #tpu.memory_space<vmem>>, %arg3: memref<192x256xbf16, #tpu.memory_space<vmem>>, %arg4: memref<256x256xbf16, #tpu.memory_space<vmem>>, %arg5: memref<1x256xf32, #tpu.memory_space<vmem>>, %arg6: memref<16x256xf32, #tpu.memory_space<vmem>>, %arg7: memref<16x256xbf16, #tpu.memory_space<vmem>>) attributes {dimension_semantics = [#tpu.dimension_semantics<parallel>, #tpu.dimension_semantics<parallel>], iteration_bounds = array<i64: 1, 1>, scalar_prefetch = 0 : i64, scratch_operands = 1 : i64, tpu.core_type = #tpu.core_type<tc>, window_params = [{transform_indices = @transform_0, window_bounds = array<i64: 16, 192>}, {pipeline_mode = #tpu.pipeline_mode<synchronous>, transform_indices = @transform_1, window_bounds = array<i64: 192, 256>}, {transform_indices = @transform_2, window_bounds = array<i64: 256, 256>}, {transform_indices = @transform_3, window_bounds = array<i64: 1, 256>}, {transform_indices = @transform_4, window_bounds = array<i64: 16, 256>}]} {
    %c0 = arith.constant 0 : index
    %c0_0 = arith.constant 0 : index
    %0 = vector.load %arg2[%c0, %c0_0] : memref<16x192xbf16, #tpu.memory_space<vmem>>, vector<16x192xbf16>
    %c0_1 = arith.constant 0 : index
    %c0_2 = arith.constant 0 : index
    %1 = vector.load %arg3[%c0_1, %c0_2] : memref<192x256xbf16, #tpu.memory_space<vmem>>, vector<192x256xbf16>
    %cst = arith.constant dense<0.000000e+00> : vector<16x256xf32>
    %2 = tpu.matmul %0, %1, %cst {dimension_numbers = #tpu.dot_dimension_numbers<[1], [0], [0], [1], [0, 0, 1, 1], [], []>} : vector<16x192xbf16>, vector<192x256xbf16>, vector<16x256xf32> -> vector<16x256xf32>
    %3 = arith.truncf %2 : vector<16x256xf32> to vector<16x256xbf16>
    %c0_3 = arith.constant 0 : index
    %c0_4 = arith.constant 0 : index
    %4 = vector.load %arg7[%c0_3, %c0_4] : memref<16x256xbf16, #tpu.memory_space<vmem>>, vector<16x256xbf16>
    tpu.vector_store %arg7[%c0_3, %c0_4], %3 {strides = array<i32>} : memref<16x256xbf16, #tpu.memory_space<vmem>>, vector<16x256xbf16>,
    %c0_5 = arith.constant 0 : index
    %c0_6 = arith.constant 0 : index
    %5 = vector.load %arg7[%c0_5, %c0_6] : memref<16x256xbf16, #tpu.memory_space<vmem>>, vector<16x256xbf16>
    %c0_7 = arith.constant 0 : index
    %c0_8 = arith.constant 0 : index
    %6 = vector.load %arg4[%c0_7, %c0_8] : memref<256x256xbf16, #tpu.memory_space<vmem>>, vector<256x256xbf16>
    %cst_9 = arith.constant dense<0.000000e+00> : vector<16x256xf32>
    %7 = tpu.matmul %5, %6, %cst_9 {dimension_numbers = #tpu.dot_dimension_numbers<[1], [0], [0], [1], [0, 0, 1, 1], [], []>} : vector<16x256xbf16>, vector<256x256xbf16>, vector<16x256xf32> -> vector<16x256xf32>
    %c0_10 = arith.constant 0 : index
    %c0_11 = arith.constant 0 : index
    %8 = vector.load %arg5[%c0_10, %c0_11] : memref<1x256xf32, #tpu.memory_space<vmem>>, vector<1x256xf32>
    %9 = vector.broadcast %8 : vector<1x256xf32> to vector<16x256xf32>
    %10 = arith.addf %7, %9 : vector<16x256xf32>
    %c0_12 = arith.constant 0 : index
    %c0_13 = arith.constant 0 : index
    %11 = vector.load %arg6[%c0_12, %c0_13] : memref<16x256xf32, #tpu.memory_space<vmem>>, vector<16x256xf32>
    tpu.vector_store %arg6[%c0_12, %c0_13], %10 {strides = array<i32>} : memref<16x256xf32, #tpu.memory_space<vmem>>, vector<16x256xf32>,
    return
  }
  func.func @transform_0(%arg0: i32, %arg1: i32) -> (i32, i32) {
    %c0_i32 = arith.constant 0 : i32
    %c0_i32_0 = arith.constant 0 : i32
    return %arg0, %c0_i32 : i32, i32
  }
  func.func @transform_1(%arg0: i32, %arg1: i32) -> (i32, i32) {
    %c0_i32 = arith.constant 0 : i32
    %c0_i32_0 = arith.constant 0 : i32
    %c0_i32_1 = arith.constant 0 : i32
    return %c0_i32, %c0_i32_0 : i32, i32
  }
  func.func @transform_2(%arg0: i32, %arg1: i32) -> (i32, i32) {
    %c0_i32 = arith.constant 0 : i32
    %c0_i32_0 = arith.constant 0 : i32
    return %c0_i32, %arg1 : i32, i32
  }
  func.func @transform_3(%arg0: i32, %arg1: i32) -> (i32, i32) {
    %c0_i32 = arith.constant 0 : i32
    %c0_i32_0 = arith.constant 0 : i32
    return %c0_i32, %arg1 : i32, i32
  }
  func.func @transform_4(%arg0: i32, %arg1: i32) -> (i32, i32) {
    %c0_i32 = arith.constant 0 : i32
    return %arg0, %arg1 : i32, i32
  }
}

</mosaic_0001>

<llo_original>
// kernel: svd_linear_forward.1
$region0: #{svd_linear_forward.1}
  #allocation0 [shape = 'u32[]', space=smem, size = 0x4, offset = 0x4, fixed_abs, tag = 'smem constant byte address 0x4 - core index']
  #allocation1 [shape = 'u32[144,128]{1,0:T(1,128)}', space=vmem, size = 0x12000, scoped, tag = 'internal scratch']
  #allocation2 [shape = 'bf16[16,256]{1,0:T(8,128)(2,1)}', space=vmem, size = 0x2000, scoped, tag = 'scratch operand']
  %s0 = inlined_call_operand.vmem [shape: bf16[16,192], index: 0, kind: input, shape index: {}]
  %s1 = inlined_call_operand.vmem [shape: bf16[192,256], index: 1, kind: input, shape index: {}]
  %s2 = inlined_call_operand.vmem [shape: bf16[256,256], index: 2, kind: input, shape index: {}]
  %s3 = inlined_call_operand.vmem [shape: f32[1,256], index: 3, kind: input, shape index: {}]
  %s4 = inlined_call_operand.vmem [shape: f32[16,256], index: 4, kind: output, shape index: {}]
  %s5 = sld [smem:[#allocation0]]
  $region26: #{svd_linear_forward.1} parent=0
    _
  %s7 = ssub.s32 1, %s5
  %s8 = scalar_select 0, %s7, %s5
  // Predicated region
  $region2: #{svd_linear_forward.1} parent=0 // pred_check
    _
  $region3: #{svd_linear_forward.1} parent=0 // pred_check_branch
    %10 = sbr.rel (0) target = $region5
  $region4: #{svd_linear_forward.1} parent=0 // pred_region
    _
  $region5: #{svd_linear_forward.1} parent=0 // pred_fallthru
    _
  // Predicated region
  $region6: #{svd_linear_forward.1} parent=0 // pred_check
    _
  $region7: #{svd_linear_forward.1} parent=0 // pred_check_branch
    %12 = sbr.rel (0) target = $region9
  $region8: #{svd_linear_forward.1} parent=0 // pred_region
    _
  $region9: #{svd_linear_forward.1} parent=0 // pred_fallthru
    _
  // Predicated region
  $region10: #{svd_linear_forward.1} parent=0 // pred_check
    _
  $region11: #{svd_linear_forward.1} parent=0 // pred_check_branch
    %14 = sbr.rel (0) target = $region13
  $region12: #{svd_linear_forward.1} parent=0 // pred_region
    _
  $region13: #{svd_linear_forward.1} parent=0 // pred_fallthru
    _
  // Predicated region
  $region14: #{svd_linear_forward.1} parent=0 // pred_check
    _
  $region15: #{svd_linear_forward.1} parent=0 // pred_check_branch
    %16 = sbr.rel (0) target = $region17
  $region16: #{svd_linear_forward.1} parent=0 // pred_region
    _
  $region17: #{svd_linear_forward.1} parent=0 // pred_fallthru
    _
  %v18 = vld [vmem:[%s0] sm:$0xff]
  %v19 = vld [vmem:[%s0 + $0x8] sm:$0xff]
  %v20 = vld [vmem:[%s1] sm:$0xff]
  %v21 = vld [vmem:[%s1 + $0x8] sm:$0xff]
  %v22 = vld [vmem:[%s1 + $0x10] sm:$0xff]
  %v23 = vld [vmem:[%s1 + $0x18] sm:$0xff]
  %v24 = vld [vmem:[%s1 + $0x20] sm:$0xff]
  %v25 = vld [vmem:[%s1 + $0x28] sm:$0xff]
  %v26 = vld [vmem:[%s1 + $0x30] sm:$0xff]
  %v27 = vld [vmem:[%s1 + $0x38] sm:$0xff]
  %v28 = vld [vmem:[%s1 + $0x40] sm:$0xff]
  %v29 = vld [vmem:[%s1 + $0x48] sm:$0xff]
  %v30 = vld [vmem:[%s1 + $0x50] sm:$0xff]
  %v31 = vld [vmem:[%s1 + $0x58] sm:$0xff]
  %v32 = vld [vmem:[%s1 + $0x60] sm:$0xff]
  %v33 = vld [vmem:[%s1 + $0x68] sm:$0xff]
  %v34 = vld [vmem:[%s1 + $0x70] sm:$0xff]
  %v35 = vld [vmem:[%s1 + $0x78] sm:$0xff]
  %v36 = vld [vmem:[%s1 + $0x80] sm:$0xff]
  %v37 = vld [vmem:[%s1 + $0x88] sm:$0xff]
  %v38 = vld [vmem:[%s1 + $0x90] sm:$0xff]
  %v39 = vld [vmem:[%s1 + $0x98] sm:$0xff]
  %v40 = vld [vmem:[%s1 + $0xa0] sm:$0xff]
  %v41 = vld [vmem:[%s1 + $0xa8] sm:$0xff]
  %v42 = vld [vmem:[%s1 + $0xb0] sm:$0xff]
  %v43 = vld [vmem:[%s1 + $0xb8] sm:$0xff]
  %v46 = vunpack.c.l.b16 %v18
  %v47 = vunpack.c.h.b16 %v18
  %v48 = vunpack.c.l.b16 %v19
  %v49 = vunpack.c.h.b16 %v19
  %v50 = vpack.c.b16 %v48, %v46
  %v51 = vpack.c.b16 %v49, %v47
  %v77 = vunpack.c.l.b16 %v20
  %v78 = vunpack.c.h.b16 %v20
  %v79 = vunpack.c.l.b16 %v21
  %v80 = vunpack.c.h.b16 %v21
  %v81 = vunpack.c.l.b16 %v22
  %v82 = vunpack.c.h.b16 %v22
  %v83 = vunpack.c.l.b16 %v23
  %v84 = vunpack.c.h.b16 %v23
  %v85 = vunpack.c.l.b16 %v24
  %v86 = vunpack.c.h.b16 %v24
  %v87 = vunpack.c.l.b16 %v25
  %v88 = vunpack.c.h.b16 %v25
  %v89 = vunpack.c.l.b16 %v26
  %v90 = vunpack.c.h.b16 %v26
  %v91 = vunpack.c.l.b16 %v27
  %v92 = vunpack.c.h.b16 %v27
  %v93 = vunpack.c.l.b16 %v28
  %v94 = vunpack.c.h.b16 %v28
  %v95 = vunpack.c.l.b16 %v29
  %v96 = vunpack.c.h.b16 %v29
  %v97 = vunpack.c.l.b16 %v30
  %v98 = vunpack.c.h.b16 %v30
  %v99 = vunpack.c.l.b16 %v31
  %v100 = vunpack.c.h.b16 %v31
  %v101 = vunpack.c.l.b16 %v32
  %v102 = vunpack.c.h.b16 %v32
  %v103 = vunpack.c.l.b16 %v33
  %v104 = vunpack.c.h.b16 %v33
  %v105 = vunpack.c.l.b16 %v34
  %v106 = vunpack.c.h.b16 %v34
  %v107 = vunpack.c.l.b16 %v35
  %v108 = vunpack.c.h.b16 %v35
  %v109 = vunpack.c.l.b16 %v36
  %v110 = vunpack.c.h.b16 %v36
  %v111 = vunpack.c.l.b16 %v37
  %v112 = vunpack.c.h.b16 %v37
  %v113 = vunpack.c.l.b16 %v38
  %v114 = vunpack.c.h.b16 %v38
  %v115 = vunpack.c.l.b16 %v39
  %v116 = vunpack.c.h.b16 %v39
  %v117 = vunpack.c.l.b16 %v40
  %v118 = vunpack.c.h.b16 %v40
  %v119 = vunpack.c.l.b16 %v41
  %v120 = vunpack.c.h.b16 %v41
  %v121 = vunpack.c.l.b16 %v42
  %v122 = vunpack.c.h.b16 %v42
  %v123 = vunpack.c.l.b16 %v43
  %v124 = vunpack.c.h.b16 %v43
  %v125 = vpack.c.b16 %v79, %v77
  %v126 = vpack.c.b16 %v80, %v78
  %v127 = vpack.c.b16 %v83, %v81
  %v128 = vpack.c.b16 %v84, %v82
  %v129 = vpack.c.b16 %v87, %v85
  %v130 = vpack.c.b16 %v88, %v86
  %v131 = vpack.c.b16 %v91, %v89
  %v132 = vpack.c.b16 %v92, %v90
  %v133 = vpack.c.b16 %v95, %v93
  %v134 = vpack.c.b16 %v96, %v94
  %v135 = vpack.c.b16 %v99, %v97
  %v136 = vpack.c.b16 %v100, %v98
  %v137 = vpack.c.b16 %v103, %v101
  %v138 = vpack.c.b16 %v104, %v102
  %v139 = vpack.c.b16 %v107, %v105
  %v140 = vpack.c.b16 %v108, %v106
  %v141 = vpack.c.b16 %v111, %v109
  %v142 = vpack.c.b16 %v112, %v110
  %v143 = vpack.c.b16 %v115, %v113
  %v144 = vpack.c.b16 %v116, %v114
  %v145 = vpack.c.b16 %v119, %v117
  %v146 = vpack.c.b16 %v120, %v118
  %v147 = vpack.c.b16 %v123, %v121
  %v148 = vpack.c.b16 %v124, %v122
  %vm173 = vcmask 523264
  %v175 = vsel %vm173, %v51, 0
  %177 = vmatprep.subr.bf16.mxu0 %v140
  %178 = vmatpush1.bf16.msra.mxu0 %v139
  %179 = vmatprep.subr.bf16.mxu0 %v138
  %180 = vmatpush1.bf16.msra.mxu0 %v137
  %181 = vmatprep.subr.bf16.mxu0 %v136
  %182 = vmatpush1.bf16.msra.mxu0 %v135
  %183 = vmatprep.subr.bf16.mxu0 %v134
  %184 = vmatpush1.bf16.msra.mxu0 %v133
  %185 = vmatprep.subr.bf16.mxu0 %v132
  %186 = vmatpush1.bf16.msra.mxu0 %v131
  %187 = vmatprep.subr.bf16.mxu0 %v130
  %188 = vmatpush1.bf16.msra.mxu0 %v129
  %189 = vmatprep.subr.bf16.mxu0 %v128
  %190 = vmatpush1.bf16.msra.mxu0 %v127
  %191 = vmatprep.subr.bf16.mxu0 %v126
  %192 = vmatpush1.bf16.msra.mxu0 %v125
  %193 = vmatprep.subr.bf16.mxu0 0
  %194 = vmatpush2.bf16.msra.mxu0 0
  %195 = vmatprep.subr.bf16.mxu0 0
  %196 = vmatpush2.bf16.msra.mxu0 0
  %197 = vmatprep.subr.bf16.mxu0 0
  %198 = vmatpush2.bf16.msra.mxu0 0
  %199 = vmatprep.subr.bf16.mxu0 0
  %200 = vmatpush2.bf16.msra.mxu0 0
  %201 = vmatprep.subr.bf16.mxu0 %v148
  %202 = vmatpush2.bf16.msra.mxu0 %v147
  %203 = vmatprep.subr.bf16.mxu0 %v146
  %204 = vmatpush2.bf16.msra.mxu0 %v145
  %205 = vmatprep.subr.bf16.mxu0 %v144
  %206 = vmatpush2.bf16.msra.mxu0 %v143
  %207 = vmatprep.subr.bf16.mxu0 %v142
  %208 = vmatpush2.bf16.msra.mxu0 %v141
  %209 = vmatprep.mubr.bf16.mxu0 %v175
  %210 = vmatmul.mubr.bf16.gmra.mxu0 %v50
  %v211 = vpop.f32.mrf.mxu0
  %v212 = vadd.f32 0.0, %v211
  %v213 = vpop.f32.mrf.mxu0
  %v214 = vadd.f32 0.0, %v213
  %v215 = vpop.f32.mrf.mxu0
  %v216 = vadd.f32 0.0, %v215
  %v217 = vpop.f32.mrf.mxu0
  %v218 = vadd.f32 0.0, %v217
  %219 = vdwg.mxu0
  %v220 = vpack.c.bf16 %v216, %v212
  %v221 = vpack.c.bf16 %v218, %v214
  %v224 = vunpack.c.l.b16 %v220
  %v225 = vunpack.c.l.b16 %v221
  %v226 = vunpack.c.h.b16 %v220
  %v227 = vunpack.c.h.b16 %v221
  %v228 = vpack.c.b16 %v225, %v224
  %v229 = vpack.c.b16 %v227, %v226
  %232 = vst [vmem:[#allocation2] sm:$0xff] %v228
  %233 = vst [vmem:[#allocation2 + $0x8] sm:$0xff] %v229
  %v234 = vld [vmem:[#allocation2] sm:$0xff]
  %v235 = vld [vmem:[#allocation2 + $0x8] sm:$0xff]
  %v236 = vld [vmem:[%s2] sm:$0xff]
  %v237 = vld [vmem:[%s2 + $0x8] sm:$0xff]
  %v238 = vld [vmem:[%s2 + $0x10] sm:$0xff]
  %v239 = vld [vmem:[%s2 + $0x18] sm:$0xff]
  %v240 = vld [vmem:[%s2 + $0x20] sm:$0xff]
  %v241 = vld [vmem:[%s2 + $0x28] sm:$0xff]
  %v242 = vld [vmem:[%s2 + $0x30] sm:$0xff]
  %v243 = vld [vmem:[%s2 + $0x38] sm:$0xff]
  %v244 = vld [vmem:[%s2 + $0x40] sm:$0xff]
  %v245 = vld [vmem:[%s2 + $0x48] sm:$0xff]
  %v246 = vld [vmem:[%s2 + $0x50] sm:$0xff]
  %v247 = vld [vmem:[%s2 + $0x58] sm:$0xff]
  %v248 = vld [vmem:[%s2 + $0x60] sm:$0xff]
  %v249 = vld [vmem:[%s2 + $0x68] sm:$0xff]
  %v250 = vld [vmem:[%s2 + $0x70] sm:$0xff]
  %v251 = vld [vmem:[%s2 + $0x78] sm:$0xff]
  %v252 = vld [vmem:[%s2 + $0x80] sm:$0xff]
  %v253 = vld [vmem:[%s2 + $0x88] sm:$0xff]
  %v254 = vld [vmem:[%s2 + $0x90] sm:$0xff]
  %v255 = vld [vmem:[%s2 + $0x98] sm:$0xff]
  %v256 = vld [vmem:[%s2 + $0xa0] sm:$0xff]
  %v257 = vld [vmem:[%s2 + $0xa8] sm:$0xff]
  %v258 = vld [vmem:[%s2 + $0xb0] sm:$0xff]
  %v259 = vld [vmem:[%s2 + $0xb8] sm:$0xff]
  %v260 = vld [vmem:[%s2 + $0xc0] sm:$0xff]
  %v261 = vld [vmem:[%s2 + $0xc8] sm:$0xff]
  %v262 = vld [vmem:[%s2 + $0xd0] sm:$0xff]
  %v263 = vld [vmem:[%s2 + $0xd8] sm:$0xff]
  %v264 = vld [vmem:[%s2 + $0xe0] sm:$0xff]
  %v265 = vld [vmem:[%s2 + $0xe8] sm:$0xff]
  %v266 = vld [vmem:[%s2 + $0xf0] sm:$0xff]
  %v267 = vld [vmem:[%s2 + $0xf8] sm:$0xff]
  %v268 = vld [vmem:[%s3] sm:$0x3]
  %v270 = vlaneseq
  %v271 = vshrl.u32 %v270, 7
  %v272 = vsub.s32 0, %v271
  %v273 = vrot.slane %v268, %v272
  %v274 = vlaneseq
  %v275 = vshrl.u32 %v274, 7
  %v276 = vsub.s32 1, %v275
  %v277 = vrot.slane %v268, %v276
  %v282 = vunpack.c.l.b16 %v234
  %v283 = vunpack.c.h.b16 %v234
  %v284 = vunpack.c.l.b16 %v235
  %v285 = vunpack.c.h.b16 %v235
  %v286 = vpack.c.b16 %v284, %v282
  %v287 = vpack.c.b16 %v285, %v283
  %v322 = vunpack.c.l.b16 %v236
  %v323 = vunpack.c.h.b16 %v236
  %v324 = vunpack.c.l.b16 %v237
  %v325 = vunpack.c.h.b16 %v237
  %v326 = vunpack.c.l.b16 %v238
  %v327 = vunpack.c.h.b16 %v238
  %v328 = vunpack.c.l.b16 %v239
  %v329 = vunpack.c.h.b16 %v239
  %v330 = vunpack.c.l.b16 %v240
  %v331 = vunpack.c.h.b16 %v240
  %v332 = vunpack.c.l.b16 %v241
  %v333 = vunpack.c.h.b16 %v241
  %v334 = vunpack.c.l.b16 %v242
  %v335 = vunpack.c.h.b16 %v242
  %v336 = vunpack.c.l.b16 %v243
  %v337 = vunpack.c.h.b16 %v243
  %v338 = vunpack.c.l.b16 %v244
  %v339 = vunpack.c.h.b16 %v244
  %v340 = vunpack.c.l.b16 %v245
  %v341 = vunpack.c.h.b16 %v245
  %v342 = vunpack.c.l.b16 %v246
  %v343 = vunpack.c.h.b16 %v246
  %v344 = vunpack.c.l.b16 %v247
  %v345 = vunpack.c.h.b16 %v247
  %v346 = vunpack.c.l.b16 %v248
  %v347 = vunpack.c.h.b16 %v248
  %v348 = vunpack.c.l.b16 %v249
  %v349 = vunpack.c.h.b16 %v249
  %v350 = vunpack.c.l.b16 %v250
  %v351 = vunpack.c.h.b16 %v250
  %v352 = vunpack.c.l.b16 %v251
  %v353 = vunpack.c.h.b16 %v251
  %v354 = vunpack.c.l.b16 %v252
  %v355 = vunpack.c.h.b16 %v252
  %v356 = vunpack.c.l.b16 %v253
  %v357 = vunpack.c.h.b16 %v253
  %v358 = vunpack.c.l.b16 %v254
  %v359 = vunpack.c.h.b16 %v254
  %v360 = vunpack.c.l.b16 %v255
  %v361 = vunpack.c.h.b16 %v255
  %v362 = vunpack.c.l.b16 %v256
  %v363 = vunpack.c.h.b16 %v256
  %v364 = vunpack.c.l.b16 %v257
  %v365 = vunpack.c.h.b16 %v257
  %v366 = vunpack.c.l.b16 %v258
  %v367 = vunpack.c.h.b16 %v258
  %v368 = vunpack.c.l.b16 %v259
  %v369 = vunpack.c.h.b16 %v259
  %v370 = vunpack.c.l.b16 %v260
  %v371 = vunpack.c.h.b16 %v260
  %v372 = vunpack.c.l.b16 %v261
  %v373 = vunpack.c.h.b16 %v261
  %v374 = vunpack.c.l.b16 %v262
  %v375 = vunpack.c.h.b16 %v262
  %v376 = vunpack.c.l.b16 %v263
  %v377 = vunpack.c.h.b16 %v263
  %v378 = vunpack.c.l.b16 %v264
  %v379 = vunpack.c.h.b16 %v264
  %v380 = vunpack.c.l.b16 %v265
  %v381 = vunpack.c.h.b16 %v265
  %v382 = vunpack.c.l.b16 %v266
  %v383 = vunpack.c.h.b16 %v266
  %v384 = vunpack.c.l.b16 %v267
  %v385 = vunpack.c.h.b16 %v267
  %v386 = vpack.c.b16 %v324, %v322
  %v387 = vpack.c.b16 %v325, %v323
  %v388 = vpack.c.b16 %v328, %v326
  %v389 = vpack.c.b16 %v329, %v327
  %v390 = vpack.c.b16 %v332, %v330
  %v391 = vpack.c.b16 %v333, %v331
  %v392 = vpack.c.b16 %v336, %v334
  %v393 = vpack.c.b16 %v337, %v335
  %v394 = vpack.c.b16 %v340, %v338
  %v395 = vpack.c.b16 %v341, %v339
  %v396 = vpack.c.b16 %v344, %v342
  %v397 = vpack.c.b16 %v345, %v343
  %v398 = vpack.c.b16 %v348, %v346
  %v399 = vpack.c.b16 %v349, %v347
  %v400 = vpack.c.b16 %v352, %v350
  %v401 = vpack.c.b16 %v353, %v351
  %v402 = vpack.c.b16 %v356, %v354
  %v403 = vpack.c.b16 %v357, %v355
  %v404 = vpack.c.b16 %v360, %v358
  %v405 = vpack.c.b16 %v361, %v359
  %v406 = vpack.c.b16 %v364, %v362
  %v407 = vpack.c.b16 %v365, %v363
  %v408 = vpack.c.b16 %v368, %v366
  %v409 = vpack.c.b16 %v369, %v367
  %v410 = vpack.c.b16 %v372, %v370
  %v411 = vpack.c.b16 %v373, %v371
  %v412 = vpack.c.b16 %v376, %v374
  %v413 = vpack.c.b16 %v377, %v375
  %v414 = vpack.c.b16 %v380, %v378
  %v415 = vpack.c.b16 %v381, %v379
  %v416 = vpack.c.b16 %v384, %v382
  %v417 = vpack.c.b16 %v385, %v383
  %450 = vmatprep.subr.bf16.mxu0 %v401
  %451 = vmatpush1.bf16.msra.mxu0 %v400
  %452 = vmatprep.subr.bf16.mxu0 %v399
  %453 = vmatpush1.bf16.msra.mxu0 %v398
  %454 = vmatprep.subr.bf16.mxu0 %v397
  %455 = vmatpush1.bf16.msra.mxu0 %v396
  %456 = vmatprep.subr.bf16.mxu0 %v395
  %457 = vmatpush1.bf16.msra.mxu0 %v394
  %458 = vmatprep.subr.bf16.mxu0 %v393
  %459 = vmatpush1.bf16.msra.mxu0 %v392
  %460 = vmatprep.subr.bf16.mxu0 %v391
  %461 = vmatpush1.bf16.msra.mxu0 %v390
  %462 = vmatprep.subr.bf16.mxu0 %v389
  %463 = vmatpush1.bf16.msra.mxu0 %v388
  %464 = vmatprep.subr.bf16.mxu0 %v387
  %465 = vmatpush1.bf16.msra.mxu0 %v386
  %466 = vmatprep.subr.bf16.mxu0 %v417
  %467 = vmatpush2.bf16.msra.mxu0 %v416
  %468 = vmatprep.subr.bf16.mxu0 %v415
  %469 = vmatpush2.bf16.msra.mxu0 %v414
  %470 = vmatprep.subr.bf16.mxu0 %v413
  %471 = vmatpush2.bf16.msra.mxu0 %v412
  %472 = vmatprep.subr.bf16.mxu0 %v411
  %473 = vmatpush2.bf16.msra.mxu0 %v410
  %474 = vmatprep.subr.bf16.mxu0 %v409
  %475 = vmatpush2.bf16.msra.mxu0 %v408
  %476 = vmatprep.subr.bf16.mxu0 %v407
  %477 = vmatpush2.bf16.msra.mxu0 %v406
  %478 = vmatprep.subr.bf16.mxu0 %v405
  %479 = vmatpush2.bf16.msra.mxu0 %v404
  %480 = vmatprep.subr.bf16.mxu0 %v403
  %481 = vmatpush2.bf16.msra.mxu0 %v402
  %482 = vmatprep.mubr.bf16.mxu0 %v287
  %483 = vmatmul.mubr.bf16.gmra.mxu0 %v286
  %v484 = vpop.f32.mrf.mxu0
  %v485 = vadd.f32 %v273, %v484
  %v486 = vpop.f32.mrf.mxu0
  %v487 = vadd.f32 %v277, %v486
  %v488 = vpop.f32.mrf.mxu0
  %v489 = vadd.f32 %v273, %v488
  %v490 = vpop.f32.mrf.mxu0
  %v491 = vadd.f32 %v277, %v490
  %492 = vdwg.mxu0
  %493 = vst [vmem:[%s4] sm:$0xff] %v485
  %494 = vst [vmem:[%s4 + $0x8] sm:$0xff] %v487
  %495 = vst [vmem:[%s4 + $0x10] sm:$0xff] %v489
  %496 = vst [vmem:[%s4 + $0x18] sm:$0xff] %v491
  // Predicated region
  $region18: #{svd_linear_forward.1} parent=0 // pred_check
    _
  $region19: #{svd_linear_forward.1} parent=0 // pred_check_branch
    %498 = sbr.rel (0) target = $region21
  $region20: #{svd_linear_forward.1} parent=0 // pred_region
    _
  $region21: #{svd_linear_forward.1} parent=0 // pred_fallthru
    _
  // Predicated region
  $region22: #{svd_linear_forward.1} parent=0 // pred_check
    _
  $region23: #{svd_linear_forward.1} parent=0 // pred_check_branch
    %500 = sbr.rel (0) target = $region25
  $region24: #{svd_linear_forward.1} parent=0 // pred_region
    _
  $region25: #{svd_linear_forward.1} parent=0 // pred_fallthru
    _

</llo_original>
